<compile_context>
chip_gen: v5e
topology: v5e:2x2
jax: 0.10.0
libtpu: 0.0.40
codegen_flags: <defaults>
</compile_context>

<pallas_src>
import functools

import jax
import jax.numpy as jnp
from jax.experimental import pallas as pl
from jax.experimental.pallas import tpu as pltpu


def _sym_kl_kernel(s_ref, l_ref, col_ref, acc, m_sc, r_sc, *, inv_tau: float, eps: float):
    """Processes one (TM, N) row strip of one split.

    acc  : (8, N) f32 VMEM packed column accumulators for this split:
             row 0: sum_i exp(w - M)     row 1: sum_i exp(w - M) * d
             row 2: sum_i l              row 3: sum_i l * d
             rows 4..7 stay zero; rows 4/5 receive the scalar partials at finalize.
    m_sc : (1, 1) f32 running scalar shift M = max(s/tau) seen by this split.
    r_sc : (1, 1) f32 row-direction (i2t) KL partial for this split.
    col_ref : (1, 8, N) output block for this split (written once, at the end).
    """
    i = pl.program_id(1)
    last = pl.num_programs(1) - 1

    @pl.when(i == 0)
    def _init():
        acc[...] = jnp.zeros_like(acc)
        m_sc[...] = jnp.full_like(m_sc, -jnp.inf)
        r_sc[...] = jnp.zeros_like(r_sc)

    # Load strip; cast in-kernel so bf16 inputs stream at half the HBM bytes.
    w = s_ref[...].astype(jnp.float32) * inv_tau            # s / tau       (TM, N)
    l = jnp.maximum(l_ref[...].astype(jnp.float32), eps)    # clip(min=eps) (TM, N)
    d = jnp.log(l) - w                                      # log l - s/tau
    ld = l * d

    # ---- row (i2t) direction: local to this strip; the ONLY full-size exp ----
    m_r = jnp.max(w, axis=1, keepdims=True)                 # (TM, 1)
    e_r = jnp.exp(w - m_r)                                  # stable exp
    ed_r = e_r * d
    row_kl = (jnp.sum(ld, axis=1, keepdims=True) / jnp.sum(l, axis=1, keepdims=True)
              - jnp.sum(ed_r, axis=1, keepdims=True) / jnp.sum(e_r, axis=1, keepdims=True))
    r_sc[...] += jnp.sum(row_kl, keepdims=True)             # (1, 1)

    # ---- column (t2i) direction: running scalar shift, reuse e_r ------------
    m_old = m_sc[...]                                       # (1, 1)
    m_new = jnp.maximum(m_old, jnp.max(m_r, keepdims=True)) # (1, 1)
    alpha = jnp.exp(m_old - m_new)                          # scalar rescale, 0 on 1st strip
    colscale = jnp.exp(m_r - m_new)                         # (TM, 1) exp only, <= 1
    e_col = e_r * colscale
    ed_col = ed_r * colscale

    n_cols = w.shape[1]
    upd = jnp.concatenate([
        jnp.sum(e_col, axis=0, keepdims=True),
        jnp.sum(ed_col, axis=0, keepdims=True),
        jnp.sum(l, axis=0, keepdims=True),
        jnp.sum(ld, axis=0, keepdims=True),
        jnp.zeros((4, n_cols), jnp.float32),
    ], axis=0)                                              # (8, N)
    rows = jax.lax.broadcasted_iota(jnp.int32, (8, 1), 0)
    scale = jnp.where(rows < 2, alpha, 1.0)                 # rescale only the exp rows
    acc[...] = acc[...] * scale + upd                       # full-sublane update
    m_sc[...] = m_new

    # ---- finalize: one packed write per split at the very end ---------------
    @pl.when(i == last)
    def _finalize():
        extra = jnp.where(rows == 4, r_sc[...],
                          jnp.where(rows == 5, m_sc[...], 0.0))  # (8, 1)
        col_ref[0] = acc[...] + extra                       # rows 4/5 carry the scalars


def _vmem_budget() -> tuple[int, int]:
    """(strip-working-set budget bytes, vmem_limit_bytes for the compiler)."""
    try:
        cap = int(pltpu.get_tpu_info().vmem_capacity_bytes)
    except Exception:
        cap = 64 * 1024 * 1024  # conservative: v7x per-TensorCore VMEM
    budget = min(cap // 2, 32 * 1024 * 1024)                 # per-strip footprint target
    limit = min(cap * 3 // 4, budget + 16 * 1024 * 1024)     # raise v5e's 16 MiB default
    return budget, limit


def _choose_block_rows(n: int, in_itemsize: int, budget_bytes: int) -> int:
    """Pick the row-strip height TM.

    Footprint model per strip: 2 inputs x 2 pipeline buffers (in input dtype)
    PLUS ~7 live (TM, N) f32 intermediates (w, l, d, ld, e_r, ed_r, e/ed_col).
    TM is a multiple of 16 for sub-4-byte inputs (unmasked bf16 loads), else 8;
    an even strip count is preferred so the split can feed both v7x cores.
    """
    per_row = n * (4 * in_itemsize + 7 * 4)
    cap = max(8, min(n, 1024, budget_bytes // max(1, per_row)))

    def search(step):
        best, best_even = None, None
        for tm in range(step, cap + 1, step):
            if n % tm == 0:
                best = tm
                if (n // tm) % 2 == 0:
                    best_even = tm
        if best_even is not None and (best is None or best_even * 2 >= best):
            return best_even
        return best

    step = 16 if in_itemsize < 4 else 8
    tm = search(step)
    if tm is None and step != 8:
        tm = search(8)
    if tm is None:
        # TODO(synk): pad N to a multiple of 8 rows (or use a BoundedSlice row
        # spec) instead of falling back to a single full-matrix strip.
        tm = n
    return tm


def sym_kl_divergence(scores: jax.Array, soft_labels: jax.Array, tau: float = 0.1,
                      block_rows: int | None = None, num_splits: int | None = None,
                      stream_bf16: bool = False) -> jax.Array:
    """Symmetric KL divergence loss matching the PyTorch sym_KL_Divergence module."""
    n, m = scores.shape
    assert n == m, "sym_KL_Divergence expects a square score matrix"
    assert soft_labels.shape == (n, n), "soft_labels must match scores' shape"

    if stream_bf16:  # halve HBM bytes on mem-bound chips; in-kernel math stays f32
        scores = scores.astype(jnp.bfloat16)
        soft_labels = soft_labels.astype(jnp.bfloat16)

    budget, vmem_limit = _vmem_budget()
    itemsize = scores.dtype.itemsize
    tm = block_rows if block_rows is not None else _choose_block_rows(n, itemsize, budget)
    assert n % tm == 0, f"block_rows={tm} must divide N={n}"
    n_strips = n // tm
    if num_splits is None:
        num_splits = 2 if (n_strips >= 2 and n_strips % 2 == 0) else 1
    assert n_strips % num_splits == 0, (n_strips, num_splits)
    spp = n_strips // num_splits  # strips per split

    kernel = functools.partial(_sym_kl_kernel, inv_tau=1.0 / float(tau), eps=1e-10)
    f32 = jnp.float32
    col = pl.pallas_call(
        kernel,
        out_shape=jax.ShapeDtypeStruct((num_splits, 8, n), f32),
        grid=(num_splits, spp),
        in_specs=[pl.BlockSpec((tm, n), lambda c, i: (c * spp + i, 0)),   # scores strip
                  pl.BlockSpec((tm, n), lambda c, i: (c * spp + i, 0))],  # soft-label strip
        out_specs=pl.BlockSpec((1, 8, n), lambda c, i: (c, 0, 0)),        # per-split partials
        scratch_shapes=[
            pltpu.VMEM((8, n), f32),   # packed column accumulators (e, e*d, l, l*d)
            pltpu.VMEM((1, 1), f32),   # running scalar shift M
            pltpu.VMEM((1, 1), f32),   # row-direction KL partial
        ],
        compiler_params=pltpu.CompilerParams(
            dimension_semantics=("parallel", "arbitrary"),   # split across cores, serial strips
            vmem_limit_bytes=int(vmem_limit),
        ),
    )(scores, soft_labels)

    # ---- O(N) merge of per-split partials + final scaling, in plain JAX ----
    row_part = col[:, 4, 0]                                   # (C,) row-direction partials
    m_part = col[:, 5, 0]                                     # (C,) per-split shifts
    m_glob = jnp.max(m_part)
    rescale = jnp.exp(m_part - m_glob)[:, None]               # (C, 1)
    e_sum = jnp.sum(col[:, 0, :] * rescale, axis=0)           # (N,)
    ed_sum = jnp.sum(col[:, 1, :] * rescale, axis=0)
    l_sum = jnp.sum(col[:, 2, :], axis=0)
    ld_sum = jnp.sum(col[:, 3, :], axis=0)
    # Guard the (documented) 0/0 case where a column underflows under the global shift.
    col_kl = jnp.sum(ld_sum / l_sum - jnp.where(e_sum > 0, ed_sum / e_sum, 0.0))
    return (0.5 / n) * (jnp.sum(row_part) + col_kl)


def _sym_kl_ref(scores: jnp.ndarray, soft_labels: jnp.ndarray, tau: float = 0.1) -> jnp.ndarray:
    """Pure-JAX reference matching the PyTorch forward exactly."""
    eps = 1e-10
    e = jnp.exp(scores / tau)
    i2t = e / (e.sum(1, keepdims=True) + eps)
    t2i = e.T / (e.T.sum(1, keepdims=True) + eps)
    l = jnp.maximum(soft_labels, eps)
    n_i2t = l / l.sum(1, keepdims=True)
    n_t2i = l.T / l.T.sum(1, keepdims=True)

    def kld_batchmean(log_input, target):       # nn.KLDivLoss(reduction='batchmean')
        return jnp.sum(target * (jnp.log(target) - log_input)) / target.shape[0]

    return 0.5 * (kld_batchmean(jnp.log(i2t), n_i2t)
                  + kld_batchmean(jnp.log(t2i), n_t2i)
                  + kld_batchmean(jnp.log(n_i2t), i2t)
                  + kld_batchmean(jnp.log(n_t2i), t2i))


if __name__ == "__main__":
    key = jax.random.PRNGKey(0)
    k_s, k_l = jax.random.split(key)
    N = 128  # batch of image/text pairs -> (N, N) similarity and soft-label matrices
    scores = jax.random.uniform(k_s, (N, N), jnp.float32, minval=-1.0, maxval=1.0)
    soft_labels = jax.random.uniform(k_l, (N, N), jnp.float32, minval=0.0, maxval=1.0)

    ref = _sym_kl_ref(scores, soft_labels, tau=0.1)

    # Explicit tiling: 4 row strips, 2-way parallel split -> grid (2, 2);
    # exercises init / online accumulation / finalize / cross-split merge.
    loss = sym_kl_divergence(scores, soft_labels, tau=0.1, block_rows=32)
    loss = jax.block_until_ready(loss)
    assert jnp.allclose(loss, ref, rtol=1e-4, atol=1e-4), (loss, ref)

    # Auto-chosen tiling (VMEM-budget-driven chooser + parallel split heuristic).
    loss_auto = sym_kl_divergence(scores, soft_labels, tau=0.1)
    loss_auto = jax.block_until_ready(loss_auto)
    assert jnp.allclose(loss_auto, ref, rtol=1e-4, atol=1e-4), (loss_auto, ref)

    print("KERNEL_OK")
</pallas_src>

<mosaic_0001>
module attributes {stable_mosaic.version = 11 : i64} {
  func.func @_sym_kl_kernel(%arg0: i32, %arg1: i32, %arg2: memref<32x128xf32, #tpu.memory_space<vmem>>, %arg3: memref<32x128xf32, #tpu.memory_space<vmem>>, %arg4: memref<1x8x128xf32, #tpu.memory_space<vmem>>, %arg5: memref<8x128xf32, #tpu.memory_space<vmem>>, %arg6: memref<1x1xf32, #tpu.memory_space<vmem>>, %arg7: memref<1x1xf32, #tpu.memory_space<vmem>>) attributes {dimension_semantics = [#tpu.dimension_semantics<parallel>, #tpu.dimension_semantics<arbitrary>], iteration_bounds = array<i64: 2, 2>, scalar_prefetch = 0 : i64, scratch_operands = 3 : i64, tpu.core_type = #tpu.core_type<tc>, window_params = [{transform_indices = @transform_0, window_bounds = array<i64: 32, 128>}, {transform_indices = @transform_1, window_bounds = array<i64: 32, 128>}, {transform_indices = @transform_2, window_bounds = array<i64: 1, 8, 128>}]} {
    %c0_i32 = arith.constant 0 : i32
    %0 = arith.cmpi eq, %arg1, %c0_i32 : i32
    %1 = arith.extui %0 : i1 to i32
    %c0_i32_0 = arith.constant 0 : i32
    %2 = arith.cmpi ne, %1, %c0_i32_0 : i32
    scf.if %2 {
      %cst_31 = arith.constant 0.000000e+00 : f32
      %79 = vector.broadcast %cst_31 : f32 to vector<8x128xf32>
      %c0_32 = arith.constant 0 : index
      %c0_33 = arith.constant 0 : index
      %80 = vector.load %arg5[%c0_32, %c0_33] : memref<8x128xf32, #tpu.memory_space<vmem>>, vector<8x128xf32>
      tpu.vector_store %arg5[%c0_32, %c0_33], %79 {strides = array<i32>} : memref<8x128xf32, #tpu.memory_space<vmem>>, vector<8x128xf32>,
      %cst_34 = arith.constant 0xFF800000 : f32
      %81 = vector.broadcast %cst_34 : f32 to vector<1x1xf32>
      %c0_35 = arith.constant 0 : index
      %c0_36 = arith.constant 0 : index
      %82 = vector.load %arg6[%c0_35, %c0_36] : memref<1x1xf32, #tpu.memory_space<vmem>>, vector<1x1xf32>
      tpu.vector_store %arg6[%c0_35, %c0_36], %81 {strides = array<i32>} : memref<1x1xf32, #tpu.memory_space<vmem>>, vector<1x1xf32>,
      %cst_37 = arith.constant 0.000000e+00 : f32
      %83 = vector.broadcast %cst_37 : f32 to vector<1x1xf32>
      %c0_38 = arith.constant 0 : index
      %c0_39 = arith.constant 0 : index
      %84 = vector.load %arg7[%c0_38, %c0_39] : memref<1x1xf32, #tpu.memory_space<vmem>>, vector<1x1xf32>
      tpu.vector_store %arg7[%c0_38, %c0_39], %83 {strides = array<i32>} : memref<1x1xf32, #tpu.memory_space<vmem>>, vector<1x1xf32>,
    } else {
    }
    %c0 = arith.constant 0 : index
    %c0_1 = arith.constant 0 : index
    %3 = vector.load %arg2[%c0, %c0_1] : memref<32x128xf32, #tpu.memory_space<vmem>>, vector<32x128xf32>
    %cst = arith.constant 1.000000e+01 : f32
    %4 = vector.broadcast %cst : f32 to vector<32x128xf32>
    %5 = arith.mulf %3, %4 : vector<32x128xf32>
    %c0_2 = arith.constant 0 : index
    %c0_3 = arith.constant 0 : index
    %6 = vector.load %arg3[%c0_2, %c0_3] : memref<32x128xf32, #tpu.memory_space<vmem>>, vector<32x128xf32>
    %cst_4 = arith.constant 1.000000e-10 : f32
    %7 = vector.broadcast %cst_4 : f32 to vector<32x128xf32>
    %8 = arith.maximumf %6, %7 : vector<32x128xf32>
    %9 = math.log %8 : vector<32x128xf32>
    %10 = arith.subf %9, %5 : vector<32x128xf32>
    %11 = arith.mulf %8, %10 : vector<32x128xf32>
    %cst_5 = arith.constant dense<0xFF800000> : vector<32xf32>
    %12 = vector.multi_reduction <maximumf>, %5, %cst_5 [1] : vector<32x128xf32> to vector<32xf32>
    %13 = vector.shape_cast %12 : vector<32xf32> to vector<32x1xf32>
    %14 = vector.broadcast %13 : vector<32x1xf32> to vector<32x128xf32>
    %15 = arith.subf %5, %14 : vector<32x128xf32>
    %16 = math.exp %15 : vector<32x128xf32>
    %17 = arith.mulf %16, %10 : vector<32x128xf32>
    %cst_6 = arith.constant dense<0.000000e+00> : vector<32xf32>
    %18 = vector.multi_reduction <add>, %11, %cst_6 [1] : vector<32x128xf32> to vector<32xf32>
    %19 = vector.shape_cast %18 : vector<32xf32> to vector<32x1xf32>
    %cst_7 = arith.constant dense<0.000000e+00> : vector<32xf32>
    %20 = vector.multi_reduction <add>, %8, %cst_7 [1] : vector<32x128xf32> to vector<32xf32>
    %21 = vector.shape_cast %20 : vector<32xf32> to vector<32x1xf32>
    %22 = arith.divf %19, %21 : vector<32x1xf32>
    %cst_8 = arith.constant dense<0.000000e+00> : vector<32xf32>
    %23 = vector.multi_reduction <add>, %17, %cst_8 [1] : vector<32x128xf32> to vector<32xf32>
    %24 = vector.shape_cast %23 : vector<32xf32> to vector<32x1xf32>
    %cst_9 = arith.constant dense<0.000000e+00> : vector<32xf32>
    %25 = vector.multi_reduction <add>, %16, %cst_9 [1] : vector<32x128xf32> to vector<32xf32>
    %26 = vector.shape_cast %25 : vector<32xf32> to vector<32x1xf32>
    %27 = arith.divf %24, %26 : vector<32x1xf32>
    %28 = arith.subf %22, %27 : vector<32x1xf32>
    %c0_10 = arith.constant 0 : index
    %c0_11 = arith.constant 0 : index
    %29 = vector.load %arg7[%c0_10, %c0_11] : memref<1x1xf32, #tpu.memory_space<vmem>>, vector<1x1xf32>
    %30 = vector.shape_cast %28 : vector<32x1xf32> to vector<1x32x1xf32>
    %cst_12 = arith.constant dense<0.000000e+00> : vector<1xf32>
    %31 = vector.multi_reduction <add>, %30, %cst_12 [1, 2] : vector<1x32x1xf32> to vector<1xf32>
    %32 = vector.shape_cast %31 : vector<1xf32> to vector<1x1x1xf32>
    %33 = vector.extract %32[0, 0, 0] : f32 from vector<1x1x1xf32>
    %34 = vector.broadcast %33 : f32 to vector<1x1xf32>
    %35 = arith.addf %29, %34 : vector<1x1xf32>
    %c0_13 = arith.constant 0 : index
    %c0_14 = arith.constant 0 : index
    %36 = vector.load %arg7[%c0_13, %c0_14] : memref<1x1xf32, #tpu.memory_space<vmem>>, vector<1x1xf32>
    tpu.vector_store %arg7[%c0_13, %c0_14], %35 {strides = array<i32>} : memref<1x1xf32, #tpu.memory_space<vmem>>, vector<1x1xf32>,
    %c0_15 = arith.constant 0 : index
    %c0_16 = arith.constant 0 : index
    %37 = vector.load %arg6[%c0_15, %c0_16] : memref<1x1xf32, #tpu.memory_space<vmem>>, vector<1x1xf32>
    %38 = vector.shape_cast %13 : vector<32x1xf32> to vector<1x32x1xf32>
    %cst_17 = arith.constant dense<0xFF800000> : vector<1xf32>
    %39 = vector.multi_reduction <maximumf>, %38, %cst_17 [1, 2] : vector<1x32x1xf32> to vector<1xf32>
    %40 = vector.shape_cast %39 : vector<1xf32> to vector<1x1x1xf32>
    %41 = vector.extract %40[0, 0, 0] : f32 from vector<1x1x1xf32>
    %42 = vector.broadcast %41 : f32 to vector<1x1xf32>
    %43 = arith.maximumf %37, %42 : vector<1x1xf32>
    %44 = arith.subf %37, %43 : vector<1x1xf32>
    %45 = math.exp %44 : vector<1x1xf32>
    %46 = vector.broadcast %43 : vector<1x1xf32> to vector<32x1xf32>
    %47 = arith.subf %13, %46 : vector<32x1xf32>
    %48 = math.exp %47 : vector<32x1xf32>
    %49 = vector.broadcast %48 : vector<32x1xf32> to vector<32x128xf32>
    %50 = arith.mulf %16, %49 : vector<32x128xf32>
    %51 = vector.broadcast %48 : vector<32x1xf32> to vector<32x128xf32>
    %52 = arith.mulf %17, %51 : vector<32x128xf32>
    %cst_18 = arith.constant dense<0.000000e+00> : vector<128xf32>
    %53 = vector.multi_reduction <add>, %50, %cst_18 [0] : vector<32x128xf32> to vector<128xf32>
    %54 = vector.shape_cast %53 : vector<128xf32> to vector<1x128xf32>
    %cst_19 = arith.constant dense<0.000000e+00> : vector<128xf32>
    %55 = vector.multi_reduction <add>, %52, %cst_19 [0] : vector<32x128xf32> to vector<128xf32>
    %56 = vector.shape_cast %55 : vector<128xf32> to vector<1x128xf32>
    %cst_20 = arith.constant dense<0.000000e+00> : vector<128xf32>
    %57 = vector.multi_reduction <add>, %8, %cst_20 [0] : vector<32x128xf32> to vector<128xf32>
    %58 = vector.shape_cast %57 : vector<128xf32> to vector<1x128xf32>
    %cst_21 = arith.constant dense<0.000000e+00> : vector<128xf32>
    %59 = vector.multi_reduction <add>, %11, %cst_21 [0] : vector<32x128xf32> to vector<128xf32>
    %60 = vector.shape_cast %59 : vector<128xf32> to vector<1x128xf32>
    %cst_22 = arith.constant 0.000000e+00 : f32
    %61 = vector.broadcast %cst_22 : f32 to vector<4x128xf32>
    %62 = tpu.concatenate %54, %56, %58, %60, %61 in 0 : vector<1x128xf32>, vector<1x128xf32>, vector<1x128xf32>, vector<1x128xf32>, vector<4x128xf32> -> vector<8x128xf32>
    %63 = tpu.iota {dimensions = array<i32: 0>} : vector<8x1xi32>
    %c2_i32 = arith.constant 2 : i32
    %64 = vector.broadcast %c2_i32 : i32 to vector<8x1xi32>
    %65 = arith.cmpi slt, %63, %64 : vector<8x1xi32>
    %cst_23 = arith.constant 1.000000e+00 : f32
    %66 = vector.shape_cast %45 : vector<1x1xf32> to vector<1x1xf32>
    %67 = vector.broadcast %66 : vector<1x1xf32> to vector<8x1xf32>
    %68 = vector.broadcast %cst_23 : f32 to vector<8x1xf32>
    %69 = arith.select %65, %67, %68 : vector<8x1xi1>, vector<8x1xf32>
    %c0_24 = arith.constant 0 : index
    %c0_25 = arith.constant 0 : index
    %70 = vector.load %arg5[%c0_24, %c0_25] : memref<8x128xf32, #tpu.memory_space<vmem>>, vector<8x128xf32>
    %71 = vector.broadcast %69 : vector<8x1xf32> to vector<8x128xf32>
    %72 = arith.mulf %70, %71 : vector<8x128xf32>
    %73 = arith.addf %72, %62 : vector<8x128xf32>
    %c0_26 = arith.constant 0 : index
    %c0_27 = arith.constant 0 : index
    %74 = vector.load %arg5[%c0_26, %c0_27] : memref<8x128xf32, #tpu.memory_space<vmem>>, vector<8x128xf32>
    tpu.vector_store %arg5[%c0_26, %c0_27], %73 {strides = array<i32>} : memref<8x128xf32, #tpu.memory_space<vmem>>, vector<8x128xf32>,
    %c0_28 = arith.constant 0 : index
    %c0_29 = arith.constant 0 : index
    %75 = vector.load %arg6[%c0_28, %c0_29] : memref<1x1xf32, #tpu.memory_space<vmem>>, vector<1x1xf32>
    tpu.vector_store %arg6[%c0_28, %c0_29], %43 {strides = array<i32>} : memref<1x1xf32, #tpu.memory_space<vmem>>, vector<1x1xf32>,
    %c1_i32 = arith.constant 1 : i32
    %76 = arith.cmpi eq, %arg1, %c1_i32 : i32
    %77 = arith.extui %76 : i1 to i32
    %c0_i32_30 = arith.constant 0 : i32
    %78 = arith.cmpi ne, %77, %c0_i32_30 : i32
    scf.if %78 {
      %c4_i32 = arith.constant 4 : i32
      %79 = vector.broadcast %c4_i32 : i32 to vector<8x1xi32>
      %80 = arith.cmpi eq, %63, %79 : vector<8x1xi32>
      %c0_31 = arith.constant 0 : index
      %c0_32 = arith.constant 0 : index
      %81 = vector.load %arg7[%c0_31, %c0_32] : memref<1x1xf32, #tpu.memory_space<vmem>>, vector<1x1xf32>
      %c5_i32 = arith.constant 5 : i32
      %82 = vector.broadcast %c5_i32 : i32 to vector<8x1xi32>
      %83 = arith.cmpi eq, %63, %82 : vector<8x1xi32>
      %c0_33 = arith.constant 0 : index
      %c0_34 = arith.constant 0 : index
      %84 = vector.load %arg6[%c0_33, %c0_34] : memref<1x1xf32, #tpu.memory_space<vmem>>, vector<1x1xf32>
      %cst_35 = arith.constant 0.000000e+00 : f32
      %85 = vector.shape_cast %84 : vector<1x1xf32> to vector<1x1xf32>
      %86 = vector.broadcast %85 : vector<1x1xf32> to vector<8x1xf32>
      %87 = vector.broadcast %cst_35 : f32 to vector<8x1xf32>
      %88 = arith.select %83, %86, %87 : vector<8x1xi1>, vector<8x1xf32>
      %89 = vector.shape_cast %81 : vector<1x1xf32> to vector<1x1xf32>
      %90 = vector.broadcast %89 : vector<1x1xf32> to vector<8x1xf32>
      %91 = arith.select %80, %90, %88 : vector<8x1xi1>, vector<8x1xf32>
      %c0_36 = arith.constant 0 : index
      %c0_37 = arith.constant 0 : index
      %92 = vector.load %arg5[%c0_36, %c0_37] : memref<8x128xf32, #tpu.memory_space<vmem>>, vector<8x128xf32>
      %93 = vector.broadcast %91 : vector<8x1xf32> to vector<8x128xf32>
      %94 = arith.addf %92, %93 : vector<8x128xf32>
      %c0_38 = arith.constant 0 : index
      %c0_39 = arith.constant 0 : index
      %c0_40 = arith.constant 0 : index
      %95 = vector.load %arg4[%c0_38, %c0_39, %c0_40] : memref<1x8x128xf32, #tpu.memory_space<vmem>>, vector<1x8x128xf32>
      %96 = vector.shape_cast %95 : vector<1x8x128xf32> to vector<8x128xf32>
      %97 = vector.shape_cast %94 : vector<8x128xf32> to vector<1x8x128xf32>
      tpu.vector_store %arg4[%c0_38, %c0_39, %c0_40], %97 {strides = array<i32>} : memref<1x8x128xf32, #tpu.memory_space<vmem>>, vector<1x8x128xf32>,
    } else {
    }
    return
  }
  func.func @transform_0(%arg0: i32, %arg1: i32) -> (i32, i32) {
    %c2_i32 = arith.constant 2 : i32
    %0 = arith.muli %arg0, %c2_i32 : i32
    %1 = arith.addi %0, %arg1 : i32
    %c0_i32 = arith.constant 0 : i32
    %c0_i32_0 = arith.constant 0 : i32
    return %1, %c0_i32 : i32, i32
  }
  func.func @transform_1(%arg0: i32, %arg1: i32) -> (i32, i32) {
    %c2_i32 = arith.constant 2 : i32
    %0 = arith.muli %arg0, %c2_i32 : i32
    %1 = arith.addi %0, %arg1 : i32
    %c0_i32 = arith.constant 0 : i32
    %c0_i32_0 = arith.constant 0 : i32
    return %1, %c0_i32 : i32, i32
  }
  func.func @transform_2(%arg0: i32, %arg1: i32) -> (i32, i32, i32) {
    %c0_i32 = arith.constant 0 : i32
    %c0_i32_0 = arith.constant 0 : i32
    %c0_i32_1 = arith.constant 0 : i32
    return %arg0, %c0_i32, %c0_i32_0 : i32, i32, i32
  }
}

</mosaic_0001>

<llo_original>
// kernel: tpu_custom_call.1
$region0: #{tpu_custom_call.1}
  #allocation0 [shape = 'u32[]', space=smem, size = 0x4, offset = 0x4, fixed_abs, tag = 'smem constant byte address 0x4 - core index']
  #allocation1 [shape = 'u32[72,128]{1,0:T(1,128)}', space=vmem, size = 0x9000, scoped, tag = 'internal scratch']
  #allocation2 [shape = 'f32[8,128]{1,0:T(8,128)}', space=vmem, size = 0x1000, scoped, tag = 'scratch operand']
  #allocation3 [shape = 'f32[1,1]{1,0:T(1,128)}', space=vmem, size = 0x200, scoped, tag = 'scratch operand']
  #allocation4 [shape = 'f32[1,1]{1,0:T(1,128)}', space=vmem, size = 0x200, scoped, tag = 'scratch operand']
  %s0 = inlined_call_operand.hbm [shape: f32[128,128], index: 0, kind: input, shape index: {}]
  %s1 = inlined_call_operand.hbm [shape: f32[128,128], index: 1, kind: input, shape index: {}]
  %s2 = inlined_call_operand.hbm [shape: f32[2,8,128], index: 2, kind: output, shape index: {}]
  %s3 = sld [smem:[#allocation0]]
  $region57: #{tpu_custom_call.1} parent=0
    _
  %s5 = ssub.s32 1, %s3
  %s6 = scalar_select 0, %s5, %s3
  $region1: #{tpu_custom_call.1} parent=0
    #allocation5 [shape = 'u8[32768]{0}', space=vmem, size = 0x8000, scoped, tag = 'input window, operand 0']
    #allocation6 [shape = 's32[2]{0}', space=sflag, size = 0x8, scoped, tag = 'scoped memory for tpu_custom_call.1']
    #allocation7 [shape = 's32[2]{0}', space=sflag, size = 0x8, scoped, tag = 'scoped memory for tpu_custom_call.1']
    #allocation8 [shape = 'u8[32768]{0}', space=vmem, size = 0x8000, scoped, tag = 'input window, operand 1']
    #allocation9 [shape = 's32[2]{0}', space=sflag, size = 0x8, scoped, tag = 'scoped memory for tpu_custom_call.1']
    #allocation10 [shape = 'u8[8192]{0}', space=vmem, size = 0x2000, scoped, tag = 'output window, operand 0']
    %7 = vsyncpa [#allocation6], 0
    %s8 = scalar_lea.sflag [#allocation6], 1
    %9 = vsyncpa %s8, 0
    %10 = vsyncpa [#allocation9], 0
    %s11 = scalar_lea.sflag [#allocation9], 1
    %12 = vsyncpa %s11, 0
    %13 = vsyncpa [#allocation7], 0
    %s14 = scalar_lea.sflag [#allocation7], 1
    %15 = vsyncpa %s14, 0
    loop: start=0, step=1, limit=6
    $region2: #{tpu_custom_call.1} parent=1 // loop_pre_header
      _
    $region3: #{tpu_custom_call.1} parent=1 // loop_header
      %s17 = sphi 0, %s21
      %p18 = scmp.ge.s32.totalorder %s17, 6
      %s24 = sphi 0, %s36
      %s25 = sphi 0, %s32
      %s26 = sphi 0, %s24
      %s27 = sphi 0, %s25
      %s28 = sphi 0, %s26
      %s29 = sphi 0, %s27
      %s43 = sphi 0, %s45
      %s46 = sphi 0, %s43
      %s47 = sphi 0, %s46
      %s63 = sphi 0, %s47
      %s73 = sphi 0, %s75
      %s76 = sphi 0, %s73
      %s77 = sphi 0, %s76
      %s93 = sphi 0, %s77
      %s99 = sphi 0, %s101
      %s102 = sphi 0, %s99
      %s103 = sphi 0, %s102
      %s119 = sphi 0, %s103
    $region4: #{tpu_custom_call.1} parent=1 // loop_header_branch
      %20 = sbr.rel (%p18) target = $region8
    $region5: #{tpu_custom_call.1} parent=1 // loop_body
      %s22 = ssub.s32 %s17, 1
      %s23 = ssub.s32 %s17, 2
      %s30 = sadd.s32 1, %s25
      %p31 = scmp.ge.s32.totalorder %s30, 2
      %s32 = scalar_select %p31, 0, %s30
      %s33 = sadd.s32 1, %s24
      %s34 = scalar_select %p31, %s33, %s24
      %p35 = scmp.ge.s32.totalorder %s34, 2
      %s36 = scalar_select %p35, 0, %s34
      %s37 = smul.u32 %s24, 2
      %s38 = sadd.s32 %s37, %s25
      %s39 = smul.u32 %s36, 2
      %s40 = sadd.s32 %s39, %s32
      %s41 = ssub.s32 %s38, %s40
      %p42 = scmp.eq.s32.totalorder %s41, 0
      %s44 = sadd.s32 %s43, 1
      %s45 = scalar_select %p42, %s43, %s44
      %p48 = pneg %p42
      %p49 = scmp.eq.s32.totalorder %s17, 3
      %p50 = por %p48, %p49
      %p51 = scmp.ne.s32.totalorder %s43, %s46
      %p52 = scmp.eq.s32.totalorder %s17, 0
      %p53 = por %p51, %p52
      %p54 = scmp.ne.s32.totalorder %s43, %s46
      %p55 = scmp.eq.s32.totalorder %s22, 3
      %p56 = por %p54, %p55
      %p57 = scmp.ne.s32.totalorder %s46, %s47
      %p58 = scmp.eq.s32.totalorder %s22, 0
      %p59 = por %p57, %p58
      %p60 = scmp.ne.s32.totalorder %s46, %s47
      %p61 = scmp.eq.s32.totalorder %s23, 3
      %p62 = por %p60, %p61
      %p64 = scmp.ne.s32.totalorder %s47, %s63
      %p65 = scmp.eq.s32.totalorder %s23, 0
      %p66 = por %p64, %p65
      %s67 = smul.u32 %s24, 2
      %s68 = sadd.s32 %s67, %s25
      %s69 = smul.u32 %s36, 2
      %s70 = sadd.s32 %s69, %s32
      %s71 = ssub.s32 %s68, %s70
      %p72 = scmp.eq.s32.totalorder %s71, 0
      %s74 = sadd.s32 %s73, 1
      %s75 = scalar_select %p72, %s73, %s74
      %p78 = pneg %p72
      %p79 = scmp.eq.s32.totalorder %s17, 3
      %p80 = por %p78, %p79
      %p81 = scmp.ne.s32.totalorder %s73, %s76
      %p82 = scmp.eq.s32.totalorder %s17, 0
      %p83 = por %p81, %p82
      %p84 = scmp.ne.s32.totalorder %s73, %s76
      %p85 = scmp.eq.s32.totalorder %s22, 3
      %p86 = por %p84, %p85
      %p87 = scmp.ne.s32.totalorder %s76, %s77
      %p88 = scmp.eq.s32.totalorder %s22, 0
      %p89 = por %p87, %p88
      %p90 = scmp.ne.s32.totalorder %s76, %s77
      %p91 = scmp.eq.s32.totalorder %s23, 3
      %p92 = por %p90, %p91
      %p94 = scmp.ne.s32.totalorder %s77, %s93
      %p95 = scmp.eq.s32.totalorder %s23, 0
      %p96 = por %p94, %p95
      %s97 = ssub.s32 %s24, %s36
      %p98 = scmp.eq.s32.totalorder %s97, 0
      %s100 = sadd.s32 %s99, 1
      %s101 = scalar_select %p98, %s99, %s100
      %p104 = pneg %p98
      %p105 = scmp.eq.s32.totalorder %s17, 3
      %p106 = por %p104, %p105
      %p107 = scmp.ne.s32.totalorder %s99, %s102
      %p108 = scmp.eq.s32.totalorder %s17, 0
      %p109 = por %p107, %p108
      %p110 = scmp.ne.s32.totalorder %s99, %s102
      %p111 = scmp.eq.s32.totalorder %s22, 3
      %p112 = por %p110, %p111
      %p113 = scmp.ne.s32.totalorder %s102, %s103
      %p114 = scmp.eq.s32.totalorder %s22, 0
      %p115 = por %p113, %p114
      %p116 = scmp.ne.s32.totalorder %s102, %s103
      %p117 = scmp.eq.s32.totalorder %s23, 3
      %p118 = por %p116, %p117
      %p120 = scmp.ne.s32.totalorder %s103, %s119
      %p121 = scmp.eq.s32.totalorder %s23, 0
      %p122 = por %p120, %p121
      %p123 = scmp.le.s32.totalorder 1, %s17
      %p124 = scmp.lt.s32.totalorder %s17, 5
      %p125 = pnand %p123, %p124
      %p126 = pneg %p125
      // Predicated region
      $region9: #{tpu_custom_call.1} parent=5 // pred_check
        _
      $region10: #{tpu_custom_call.1} parent=5 // pred_check_branch
        %128 = sbr.rel (%p125) target = $region12
      $region11: #{tpu_custom_call.1} parent=5 // pred_region
        %s129 = ssub.s32 %s17, 1
      $region12: #{tpu_custom_call.1} parent=5 // pred_fallthru
        _
      %p130 = scmp.lt.s32.totalorder %s17, 4
      // Predicated region
      $region13: #{tpu_custom_call.1} parent=5 // pred_check
        %p131 = pneg %p130
      $region14: #{tpu_custom_call.1} parent=5 // pred_check_branch
        %133 = sbr.rel (%p131) target = $region16
      $region15: #{tpu_custom_call.1} parent=5 // pred_region
        // Predicated region
        $region17: #{tpu_custom_call.1} parent=15 // pred_check
          %p134 = pneg %p53
        $region18: #{tpu_custom_call.1} parent=15 // pred_check_branch
          %136 = sbr.rel (%p134) target = $region20
        $region19: #{tpu_custom_call.1} parent=15 // pred_region
          %s137 = sand.u32 %s43, 1
          %s138 = scalar_lea.sflag [#allocation6], %s137
          %s139 = sand.u32 %s43, 1
          %s140 = smul.addr %s139, 32
          %s141 = scalar_lea.vmem [#allocation5], %s140
          %s142 = smul.u32 %s24, 2
          %s143 = sadd.s32 %s142, %s25
          %s144 = smul.u32 4, %s143
          %146 = vsyncadd %s138, 0
          %s147 = smul.addr %s144, 8
          %s148 = scalar_lea.hbm %s0, %s147
          %s149 = sshll.u32 %s148, 4
          %s150 = int_to_ptr.hbm [resolvable:$true] %s149
          %s151 = sshll.u32 %s141, 4
          %s152 = int_to_ptr.vmem [resolvable:$true] %s151
          %157 = dma.hbm_to_vmem [thread:$0]  %s150, 512, %s152, %s138, 128, 128, 8
        $region20: #{tpu_custom_call.1} parent=15 // pred_fallthru
          _
        // Predicated region
        $region21: #{tpu_custom_call.1} parent=15 // pred_check
          %p158 = pneg %p83
        $region22: #{tpu_custom_call.1} parent=15 // pred_check_branch
          %160 = sbr.rel (%p158) target = $region24
        $region23: #{tpu_custom_call.1} parent=15 // pred_region
          %s161 = sand.u32 %s73, 1
          %s162 = scalar_lea.sflag [#allocation9], %s161
          %s163 = sand.u32 %s73, 1
          %s164 = smul.addr %s163, 32
          %s165 = scalar_lea.vmem [#allocation8], %s164
          %s166 = smul.u32 %s24, 2
          %s167 = sadd.s32 %s166, %s25
          %s168 = smul.u32 4, %s167
          %170 = vsyncadd %s162, 0
          %s171 = smul.addr %s168, 8
          %s172 = scalar_lea.hbm %s1, %s171
          %s173 = sshll.u32 %s172, 4
          %s174 = int_to_ptr.hbm [resolvable:$true] %s173
          %s175 = sshll.u32 %s165, 4
          %s176 = int_to_ptr.vmem [resolvable:$true] %s175
          %181 = dma.hbm_to_vmem [thread:$0]  %s174, 512, %s176, %s162, 128, 128, 8
        $region24: #{tpu_custom_call.1} parent=15 // pred_fallthru
          _
      $region16: #{tpu_custom_call.1} parent=5 // pred_fallthru
        _
      %p182 = scmp.le.s32.totalorder 1, %s17
      %p183 = scmp.lt.s32.totalorder %s17, 5
      %p184 = pnand %p182, %p183
      %p185 = pneg %p184
      // Predicated region
      $region25: #{tpu_custom_call.1} parent=5 // pred_check
        _
      $region26: #{tpu_custom_call.1} parent=5 // pred_check_branch
        %187 = sbr.rel (%p184) target = $region28
      $region27: #{tpu_custom_call.1} parent=5 // pred_region
        %s188 = ssub.s32 %s17, 1
        %s189 = sand.u32 %s46, 1
        %s190 = scalar_lea.sflag [#allocation6], %s189
        %s191 = sand.u32 %s46, 1
        %s192 = smul.addr %s191, 32
        %s193 = scalar_lea.vmem [#allocation5], %s192
        // Predicated region
        $region29: #{tpu_custom_call.1} parent=27 // pred_check
          %p194 = pneg %p59
        $region30: #{tpu_custom_call.1} parent=27 // pred_check_branch
          %196 = sbr.rel (%p194) target = $region32
        $region31: #{tpu_custom_call.1} parent=27 // pred_region
          %198 = dma.done %s190, 512
        $region32: #{tpu_custom_call.1} parent=27 // pred_fallthru
          _
        %s199 = sand.u32 %s76, 1
        %s200 = scalar_lea.sflag [#allocation9], %s199
        %s201 = sand.u32 %s76, 1
        %s202 = smul.addr %s201, 32
        %s203 = scalar_lea.vmem [#allocation8], %s202
        // Predicated region
        $region33: #{tpu_custom_call.1} parent=27 // pred_check
          %p204 = pneg %p89
        $region34: #{tpu_custom_call.1} parent=27 // pred_check_branch
          %206 = sbr.rel (%p204) target = $region36
        $region35: #{tpu_custom_call.1} parent=27 // pred_region
          %208 = dma.done %s200, 512
        $region36: #{tpu_custom_call.1} parent=27 // pred_fallthru
          _
        %s209 = sand.u32 %s46, 1
        %s210 = scalar_lea.sflag [#allocation6], %s209
        %s211 = sand.u32 %s46, 1
        %s212 = smul.addr %s211, 32
        %s213 = scalar_lea.vmem [#allocation5], %s212
        %p214 = pneg %p59
        %p215 = pneg %p56
        %s216 = sand.u32 %s76, 1
        %s217 = scalar_lea.sflag [#allocation9], %s216
        %s218 = sand.u32 %s76, 1
        %s219 = smul.addr %s218, 32
        %s220 = scalar_lea.vmem [#allocation8], %s219
        %p221 = pneg %p89
        %p222 = pneg %p86
        %p223 = pneg %p115
        %p224 = pneg %p112
        %s225 = sand.u32 %s102, 1
        %s226 = scalar_lea.sflag [#allocation7], %s225
        %s227 = sand.u32 %s102, 1
        %s228 = smul.addr %s227, 8
        %s229 = scalar_lea.vmem [#allocation10], %s228
        %s230 = smul.u32 %s26, 2
        %s231 = sadd.s32 %s230, %s27
        %s232 = smul.u32 4, %s231
        %s233 = smul.u32 %s26, 2
        %s234 = sadd.s32 %s233, %s27
        %s235 = smul.u32 4, %s234
        %p236 = scmp.eq.s32.totalorder %s27, 0
        // Predicated region
        $region37: #{tpu_custom_call.1} parent=27 // pred_check
          %p237 = pneg %p236
        $region38: #{tpu_custom_call.1} parent=27 // pred_check_branch
          %239 = sbr.rel (%p237) target = $region40
        $region39: #{tpu_custom_call.1} parent=27 // pred_region
          %240 = vst [vmem:[#allocation2] sm:$0xff] 0.0
          %vm241 = vcmask 0
          %242 = vst.msk [vmem:[#allocation3] sm:$0x1] %vm241, -inf
          %243 = vst.msk [vmem:[#allocation4] sm:$0x1] %vm241, 0.0
        $region40: #{tpu_custom_call.1} parent=27 // pred_fallthru
          _
        %v244 = vld [vmem:[%s193] sm:$0xff]
        %v245 = vld [vmem:[%s193 + $0x8] sm:$0xff]
        %v246 = vld [vmem:[%s193 + $0x10] sm:$0xff]
        %v247 = vld [vmem:[%s193 + $0x18] sm:$0xff]
        %v248 = vmul.f32 %v244, 10.0
        %v249 = vmul.f32 %v245, 10.0
        %v250 = vmul.f32 %v246, 10.0
        %v251 = vmul.f32 %v247, 10.0
        %v252 = vld [vmem:[%s203] sm:$0xff]
        %v253 = vld [vmem:[%s203 + $0x8] sm:$0xff]
        %v254 = vld [vmem:[%s203 + $0x10] sm:$0xff]
        %v255 = vld [vmem:[%s203 + $0x18] sm:$0xff]
        %v256 = vmax.f32 %v252, 1e-10
        %v257 = vmax.f32 %v253, 1e-10
        %v258 = vmax.f32 %v254, 1e-10
        %v259 = vmax.f32 %v255, 1e-10
        %v260 = vlog2.pop %v256
        %v261 = vmul.f32 %v260, 0.6931472
        %v262 = vlog2.pop %v257
        %v263 = vmul.f32 %v262, 0.6931472
        %v264 = vlog2.pop %v258
        %v265 = vmul.f32 %v264, 0.6931472
        %v266 = vlog2.pop %v259
        %v267 = vmul.f32 %v266, 0.6931472
        %v268 = vsub.f32 %v261, %v248
        %v269 = vsub.f32 %v263, %v249
        %v270 = vsub.f32 %v265, %v250
        %v271 = vsub.f32 %v267, %v251
        %v272 = vmul.f32 %v256, %v268
        %v273 = vmul.f32 %v257, %v269
        %v274 = vmul.f32 %v258, %v270
        %v275 = vmul.f32 %v259, %v271
        %276 = vmax.xlane.f32.xlu0 %v248
        %v277 = vpop.xlane.xlu0 %276
        %278 = vmax.xlane.f32.xlu0 %v249
        %v279 = vpop.xlane.xlu0 %278
        %280 = vmax.xlane.f32.xlu0 %v250
        %v281 = vpop.xlane.xlu0 %280
        %282 = vmax.xlane.f32.xlu0 %v251
        %v283 = vpop.xlane.xlu0 %282
        %v284 = vsub.f32 %v248, %v277
        %v285 = vsub.f32 %v249, %v279
        %v286 = vsub.f32 %v250, %v281
        %v287 = vsub.f32 %v251, %v283
        %v288 = vmul.f32 %v284, 1.442695
        %v289 = vpow.pop %v288
        %v290 = vmul.f32 %v285, 1.442695
        %v291 = vpow.pop %v290
        %v292 = vmul.f32 %v286, 1.442695
        %v293 = vpow.pop %v292
        %v294 = vmul.f32 %v287, 1.442695
        %v295 = vpow.pop %v294
        %v296 = vmul.f32 %v289, %v268
        %v297 = vmul.f32 %v291, %v269
        %v298 = vmul.f32 %v293, %v270
        %v299 = vmul.f32 %v295, %v271
        %300 = vadd.xlane.f32.xlu0 %v272
        %v301 = vpop.xlane.xlu0 %300
        %302 = vadd.xlane.f32.xlu0 %v273
        %v303 = vpop.xlane.xlu0 %302
        %304 = vadd.xlane.f32.xlu0 %v274
        %v305 = vpop.xlane.xlu0 %304
        %306 = vadd.xlane.f32.xlu0 %v275
        %v307 = vpop.xlane.xlu0 %306
        %308 = vadd.xlane.f32.xlu0 %v256
        %v309 = vpop.xlane.xlu0 %308
        %310 = vadd.xlane.f32.xlu0 %v257
        %v311 = vpop.xlane.xlu0 %310
        %312 = vadd.xlane.f32.xlu0 %v258
        %v313 = vpop.xlane.xlu0 %312
        %314 = vadd.xlane.f32.xlu0 %v259
        %v315 = vpop.xlane.xlu0 %314
        %v316 = vrcp.pop %v309
        %v317 = vmul.f32 %v309, %v316
        %v318 = vsub.f32 1.0, %v317
        %v319 = vmul.f32 %v316, %v318
        %v320 = vadd.f32 %v316, %v319
        %vm321 = vweird.f32 %v309
        %vm322 = vweird.f32 %v316
        %vm323 = vmor %vm321, %vm322
        %v324 = vsel %vm323, %v316, %v320
        %v325 = vand.u32 2147483647, %v309
        %vm326 = vcmp.eq.f32.partialorder %v325, 8.507059e+37
        %v327 = vand.u32 %v309, 2147483648
        %v328 = vor.u32 1.1754944e-38, %v327
        %v329 = vsel %vm326, %v328, %v324
        %v330 = vmul.f32 %v301, %v329
        %v331 = vrcp.pop %v311
        %v332 = vmul.f32 %v311, %v331
        %v333 = vsub.f32 1.0, %v332
        %v334 = vmul.f32 %v331, %v333
        %v335 = vadd.f32 %v331, %v334
        %vm336 = vweird.f32 %v311
        %vm337 = vweird.f32 %v331
        %vm338 = vmor %vm336, %vm337
        %v339 = vsel %vm338, %v331, %v335
        %v340 = vand.u32 2147483647, %v311
        %vm341 = vcmp.eq.f32.partialorder %v340, 8.507059e+37
        %v342 = vand.u32 %v311, 2147483648
        %v343 = vor.u32 1.1754944e-38, %v342
        %v344 = vsel %vm341, %v343, %v339
        %v345 = vmul.f32 %v303, %v344
        %v346 = vrcp.pop %v313
        %v347 = vmul.f32 %v313, %v346
        %v348 = vsub.f32 1.0, %v347
        %v349 = vmul.f32 %v346, %v348
        %v350 = vadd.f32 %v346, %v349
        %vm351 = vweird.f32 %v313
        %vm352 = vweird.f32 %v346
        %vm353 = vmor %vm351, %vm352
        %v354 = vsel %vm353, %v346, %v350
        %v355 = vand.u32 2147483647, %v313
        %vm356 = vcmp.eq.f32.partialorder %v355, 8.507059e+37
        %v357 = vand.u32 %v313, 2147483648
        %v358 = vor.u32 1.1754944e-38, %v357
        %v359 = vsel %vm356, %v358, %v354
        %v360 = vmul.f32 %v305, %v359
        %v361 = vrcp.pop %v315
        %v362 = vmul.f32 %v315, %v361
        %v363 = vsub.f32 1.0, %v362
        %v364 = vmul.f32 %v361, %v363
        %v365 = vadd.f32 %v361, %v364
        %vm366 = vweird.f32 %v315
        %vm367 = vweird.f32 %v361
        %vm368 = vmor %vm366, %vm367
        %v369 = vsel %vm368, %v361, %v365
        %v370 = vand.u32 2147483647, %v315
        %vm371 = vcmp.eq.f32.partialorder %v370, 8.507059e+37
        %v372 = vand.u32 %v315, 2147483648
        %v373 = vor.u32 1.1754944e-38, %v372
        %v374 = vsel %vm371, %v373, %v369
        %v375 = vmul.f32 %v307, %v374
        %376 = vadd.xlane.f32.xlu0 %v296
        %v377 = vpop.xlane.xlu0 %376
        %378 = vadd.xlane.f32.xlu0 %v297
        %v379 = vpop.xlane.xlu0 %378
        %380 = vadd.xlane.f32.xlu0 %v298
        %v381 = vpop.xlane.xlu0 %380
        %382 = vadd.xlane.f32.xlu0 %v299
        %v383 = vpop.xlane.xlu0 %382
        %384 = vadd.xlane.f32.xlu0 %v289
        %v385 = vpop.xlane.xlu0 %384
        %386 = vadd.xlane.f32.xlu0 %v291
        %v387 = vpop.xlane.xlu0 %386
        %388 = vadd.xlane.f32.xlu0 %v293
        %v389 = vpop.xlane.xlu0 %388
        %390 = vadd.xlane.f32.xlu0 %v295
        %v391 = vpop.xlane.xlu0 %390
        %v392 = vrcp.pop %v385
        %v393 = vmul.f32 %v385, %v392
        %v394 = vsub.f32 1.0, %v393
        %v395 = vmul.f32 %v392, %v394
        %v396 = vadd.f32 %v392, %v395
        %vm397 = vweird.f32 %v385
        %vm398 = vweird.f32 %v392
        %vm399 = vmor %vm397, %vm398
        %v400 = vsel %vm399, %v392, %v396
        %v401 = vand.u32 2147483647, %v385
        %vm402 = vcmp.eq.f32.partialorder %v401, 8.507059e+37
        %v403 = vand.u32 %v385, 2147483648
        %v404 = vor.u32 1.1754944e-38, %v403
        %v405 = vsel %vm402, %v404, %v400
        %v406 = vmul.f32 %v377, %v405
        %v407 = vrcp.pop %v387
        %v408 = vmul.f32 %v387, %v407
        %v409 = vsub.f32 1.0, %v408
        %v410 = vmul.f32 %v407, %v409
        %v411 = vadd.f32 %v407, %v410
        %vm412 = vweird.f32 %v387
        %vm413 = vweird.f32 %v407
        %vm414 = vmor %vm412, %vm413
        %v415 = vsel %vm414, %v407, %v411
        %v416 = vand.u32 2147483647, %v387
        %vm417 = vcmp.eq.f32.partialorder %v416, 8.507059e+37
        %v418 = vand.u32 %v387, 2147483648
        %v419 = vor.u32 1.1754944e-38, %v418
        %v420 = vsel %vm417, %v419, %v415
        %v421 = vmul.f32 %v379, %v420
        %v422 = vrcp.pop %v389
        %v423 = vmul.f32 %v389, %v422
        %v424 = vsub.f32 1.0, %v423
        %v425 = vmul.f32 %v422, %v424
        %v426 = vadd.f32 %v422, %v425
        %vm427 = vweird.f32 %v389
        %vm428 = vweird.f32 %v422
        %vm429 = vmor %vm427, %vm428
        %v430 = vsel %vm429, %v422, %v426
        %v431 = vand.u32 2147483647, %v389
        %vm432 = vcmp.eq.f32.partialorder %v431, 8.507059e+37
        %v433 = vand.u32 %v389, 2147483648
        %v434 = vor.u32 1.1754944e-38, %v433
        %v435 = vsel %vm432, %v434, %v430
        %v436 = vmul.f32 %v381, %v435
        %v437 = vrcp.pop %v391
        %v438 = vmul.f32 %v391, %v437
        %v439 = vsub.f32 1.0, %v438
        %v440 = vmul.f32 %v437, %v439
        %v441 = vadd.f32 %v437, %v440
        %vm442 = vweird.f32 %v391
        %vm443 = vweird.f32 %v437
        %vm444 = vmor %vm442, %vm443
        %v445 = vsel %vm444, %v437, %v441
        %v446 = vand.u32 2147483647, %v391
        %vm447 = vcmp.eq.f32.partialorder %v446, 8.507059e+37
        %v448 = vand.u32 %v391, 2147483648
        %v449 = vor.u32 1.1754944e-38, %v448
        %v450 = vsel %vm447, %v449, %v445
        %v451 = vmul.f32 %v383, %v450
        %v452 = vsub.f32 %v330, %v406
        %v453 = vsub.f32 %v345, %v421
        %v454 = vsub.f32 %v360, %v436
        %v455 = vsub.f32 %v375, %v451
        %v456 = vld [vmem:[#allocation4] sm:$0x1]
        %vm457 = vcmask 7168
        %v458 = vsel %vm457, %v452, 0.0
        %v459 = vsel %vm457, %v453, 0.0
        %v460 = vadd.f32 %v458, %v459
        %v461 = vsel %vm457, %v454, 0.0
        %v462 = vadd.f32 %v460, %v461
        %v463 = vsel %vm457, %v455, 0.0
        %v464 = vadd.f32 %v462, %v463
        %465 = vadd.xlane.f32.xlu0 %v464
        %v466 = vpop.xlane.xlu0 %465
        %v467 = vrot.slane %v466, 4
        %v468 = vadd.f32 %v466, %v467
        %v469 = vrot.slane %v468, 2
        %v470 = vadd.f32 %v468, %v469
        %v471 = vrot.slane %v470, 1
        %v472 = vadd.f32 %v470, %v471
        %s473 = vtos %v472
        %v474 = vstv %s473
        %v475 = vadd.f32 %v456, %v474
        %vm476 = vcmask 0
        %477 = vst.msk [vmem:[#allocation4] sm:$0x1] %vm476, %v475
        %v478 = vld [vmem:[#allocation3] sm:$0x1]
        %v479 = vmax.f32 %v277, %v279
        %v480 = vmax.f32 %v281, %v283
        %v481 = vmax.f32 %v479, %v480
        %v482 = vrot.slane %v481, 4
        %v483 = vmax.f32 %v481, %v482
        %v484 = vrot.slane %v483, 2
        %v485 = vmax.f32 %v483, %v484
        %v486 = vrot.slane %v485, 1
        %v487 = vmax.f32 %v485, %v486
        %s488 = vtos %v487
        %v489 = vstv %s488
        %v490 = vmax.f32 %v478, %v489
        %v491 = vsub.f32 %v478, %v490
        %v492 = vmul.f32 %v491, 1.442695
        %v493 = vpow.pop %v492
        %v495 = vperm.slane %v490, 0
        %v497 = vsub.f32 %v277, %v495
        %v498 = vsub.f32 %v279, %v495
        %v499 = vsub.f32 %v281, %v495
        %v500 = vsub.f32 %v283, %v495
        %v501 = vmul.f32 %v497, 1.442695
        %v502 = vpow.pop %v501
        %v503 = vmul.f32 %v498, 1.442695
        %v504 = vpow.pop %v503
        %v505 = vmul.f32 %v499, 1.442695
        %v506 = vpow.pop %v505
        %v507 = vmul.f32 %v500, 1.442695
        %v508 = vpow.pop %v507
        %510 = vset.pattern.permute.xlu0 0
        %511 = vperm.xlu0 %510, %v502
        %v512 = vpop.permute.xlu0 %511
        %515 = vset.pattern.permute.xlu0 0
        %516 = vperm.xlu0 %515, %v504
        %v517 = vpop.permute.xlu0 %516
        %520 = vset.pattern.permute.xlu0 0
        %521 = vperm.xlu0 %520, %v506
        %v522 = vpop.permute.xlu0 %521
        %525 = vset.pattern.permute.xlu0 0
        %526 = vperm.xlu0 %525, %v508
        %v527 = vpop.permute.xlu0 %526
        %v529 = vmul.f32 %v289, %v512
        %v530 = vmul.f32 %v291, %v517
        %v531 = vmul.f32 %v293, %v522
        %v532 = vmul.f32 %v295, %v527
        %v533 = vmul.f32 %v296, %v512
        %v534 = vmul.f32 %v297, %v517
        %v535 = vmul.f32 %v298, %v522
        %v536 = vmul.f32 %v299, %v527
        %v537 = vadd.f32 %v529, %v530
        %v538 = vadd.f32 %v537, %v531
        %v539 = vadd.f32 %v538, %v532
        %v540 = vrot.slane %v539, 4
        %v541 = vadd.f32 %v539, %v540
        %v542 = vrot.slane %v541, 2
        %v543 = vadd.f32 %v541, %v542
        %v544 = vrot.slane %v543, 1
        %v545 = vadd.f32 %v543, %v544
        %v546 = vadd.f32 %v533, %v534
        %v547 = vadd.f32 %v546, %v535
        %v548 = vadd.f32 %v547, %v536
        %v549 = vrot.slane %v548, 4
        %v550 = vadd.f32 %v548, %v549
        %v551 = vrot.slane %v550, 2
        %v552 = vadd.f32 %v550, %v551
        %v553 = vrot.slane %v552, 1
        %v554 = vadd.f32 %v552, %v553
        %v555 = vadd.f32 %v256, %v257
        %v556 = vadd.f32 %v555, %v258
        %v557 = vadd.f32 %v556, %v259
        %v558 = vrot.slane %v557, 4
        %v559 = vadd.f32 %v557, %v558
        %v560 = vrot.slane %v559, 2
        %v561 = vadd.f32 %v559, %v560
        %v562 = vrot.slane %v561, 1
        %v563 = vadd.f32 %v561, %v562
        %v564 = vadd.f32 %v272, %v273
        %v565 = vadd.f32 %v564, %v274
        %v566 = vadd.f32 %v565, %v275
        %v567 = vrot.slane %v566, 4
        %v568 = vadd.f32 %v566, %v567
        %v569 = vrot.slane %v568, 2
        %v570 = vadd.f32 %v568, %v569
        %v571 = vrot.slane %v570, 1
        %v572 = vadd.f32 %v570, %v571
        %vm573 = vcmask 1040384
        %v574 = vsel %vm573, %v545, %v554
        %vm575 = vcmask 1041408
        %v576 = vsel %vm575, %v574, %v563
        %vm577 = vcmask 1042432
        %v578 = vsel %vm577, %v576, %v572
        %vm579 = vcmask 1043456
        %v580 = vsel %vm579, %v578, 0.0
        %v581 = vlaneseq
        %v582 = vshrl.u32 %v581, 7
        %vm583 = vcmp.lt.s32.totalorder %v582, 2
        %v585 = vperm.slane %v493, 0
        %v587 = vsel %vm583, %v585, 1.0
        %v588 = vld [vmem:[#allocation2] sm:$0xff]
        %590 = vset.pattern.permute.xlu0 0
        %591 = vperm.xlu0 %590, %v587
        %v592 = vpop.permute.xlu0 %591
        %v594 = vmul.f32 %v588, %v592
        %v595 = vadd.f32 %v594, %v580
        %596 = vst [vmem:[#allocation2] sm:$0xff] %v595
        %597 = vst.msk [vmem:[#allocation3] sm:$0x1] %vm476, %v490
        %p598 = scmp.eq.s32.totalorder %s27, 1
        // Predicated region
        $region41: #{tpu_custom_call.1} parent=27 // pred_check
          %p599 = pneg %p598
        $region42: #{tpu_custom_call.1} parent=27 // pred_check_branch
          %601 = sbr.rel (%p599) target = $region44
        $region43: #{tpu_custom_call.1} parent=27 // pred_region
          %vm602 = vcmp.eq.s32.totalorder %v582, 4
          %v603 = vld [vmem:[#allocation4] sm:$0x1]
          %vm604 = vcmp.eq.s32.totalorder %v582, 5
          %v605 = vld [vmem:[#allocation3] sm:$0x1]
          %v607 = vperm.slane %v605, 0
          %v609 = vsel %vm604, %v607, 0.0
          %v611 = vperm.slane %v603, 0
          %v613 = vsel %vm602, %v611, %v609
          %v614 = vld [vmem:[#allocation2] sm:$0xff]
          %616 = vset.pattern.permute.xlu0 0
          %617 = vperm.xlu0 %616, %v613
          %v618 = vpop.permute.xlu0 %617
          %v620 = vadd.f32 %v614, %v618
          %621 = vst [vmem:[%s229] sm:$0xff] %v620
        $region44: #{tpu_custom_call.1} parent=27 // pred_fallthru
          _
        %s622 = sand.u32 %s102, 1
        %s623 = scalar_lea.sflag [#allocation7], %s622
        %s624 = sand.u32 %s102, 1
        %s625 = smul.addr %s624, 8
        %s626 = scalar_lea.vmem [#allocation10], %s625
        // Predicated region
        $region45: #{tpu_custom_call.1} parent=27 // pred_check
          %p627 = pneg %p112
        $region46: #{tpu_custom_call.1} parent=27 // pred_check_branch
          %629 = sbr.rel (%p627) target = $region48
        $region47: #{tpu_custom_call.1} parent=27 // pred_region
          %631 = vsyncadd %s623, 0
          %s632 = smul.addr %s26, 8
          %s633 = scalar_lea.hbm %s2, %s632
          %s635 = sshll.u32 %s626, 4
          %s636 = int_to_ptr.vmem [resolvable:$true] %s635
          %s637 = sshll.u32 %s633, 4
          %s638 = int_to_ptr.hbm [resolvable:$true] %s637
          %640 = dma.vmem_to_hbm [thread:$0]  %s636, 128, %s638, %s623
        $region48: #{tpu_custom_call.1} parent=27 // pred_fallthru
          _
      $region28: #{tpu_custom_call.1} parent=5 // pred_fallthru
        _
      %p641 = scmp.le.s32.totalorder 2, %s17
      // Predicated region
      $region49: #{tpu_custom_call.1} parent=5 // pred_check
        %p642 = pneg %p641
      $region50: #{tpu_custom_call.1} parent=5 // pred_check_branch
        %644 = sbr.rel (%p642) target = $region52
      $region51: #{tpu_custom_call.1} parent=5 // pred_region
        %s645 = ssub.s32 %s17, 2
        // Predicated region
        $region53: #{tpu_custom_call.1} parent=51 // pred_check
          %p646 = pneg %p118
        $region54: #{tpu_custom_call.1} parent=51 // pred_check_branch
          %648 = sbr.rel (%p646) target = $region56
        $region55: #{tpu_custom_call.1} parent=51 // pred_region
          %s649 = sand.u32 %s103, 1
          %s650 = scalar_lea.sflag [#allocation7], %s649
          %s651 = sand.u32 %s103, 1
          %s652 = smul.addr %s651, 8
          %s653 = scalar_lea.vmem [#allocation10], %s652
          %655 = dma.done %s650, 128
        $region56: #{tpu_custom_call.1} parent=51 // pred_fallthru
          _
      $region52: #{tpu_custom_call.1} parent=5 // pred_fallthru
        _
    $region6: #{tpu_custom_call.1} parent=1 // loop_footer
      %s21 = sadd.s32 1, %s17
    $region7: #{tpu_custom_call.1} parent=1 // loop_footer_branch
      %16 = sbr.rel target = $region3
    $region8: #{tpu_custom_call.1} parent=1 // loop_exit
      _
    %656 = vsyncpa [#allocation6], 1
    %s657 = scalar_lea.sflag [#allocation6], 1
    %658 = vsyncpa %s657, 1
    %659 = vsyncpa [#allocation9], 1
    %s660 = scalar_lea.sflag [#allocation9], 1
    %661 = vsyncpa %s660, 1
    %662 = vsyncpa [#allocation7], 1
    %s663 = scalar_lea.sflag [#allocation7], 1
    %664 = vsyncpa %s663, 1

</llo_original>
